<compile_context>
chip_gen: v5e
topology: v5e:2x2
jax: 0.10.0
libtpu: 0.0.40
codegen_flags: <defaults>
</compile_context>

<pallas_src>
import jax
import jax.numpy as jnp
from jax.experimental import pallas as pl
from jax.experimental.pallas import tpu as pltpu


# -----------------------------------------------------------------------------
# Kernel: one grid step == one batch of B list elements.
# -----------------------------------------------------------------------------
def _fused_kernel(c1_ref, g1t_ref, t2_ref, r3_ref, out_ref):
    """
    c1_ref : (N, K1)           resident across all grid steps
    g1t_ref: (B, K1, M_pad)    pre-transposed, lane-dense G1 tiles
    t2_ref : (B, N, 1)         per-i column  C2 @ O1[i].T
    r3_ref : (B, 1, M_pad)     per-i row     O2[i] @ G2[i].T
    out_ref: (B, N, M_pad)
    """
    c1 = c1_ref[...]
    B = out_ref.shape[0]
    for b in range(B):  # static, unrolled: B small by construction
        t1 = jnp.dot(c1, g1t_ref[b], preferred_element_type=jnp.float32)  # (N, M_pad) MXU
        out_ref[b] = t1 + t2_ref[b] + r3_ref[b]                            # fused VPU epilogue


# -----------------------------------------------------------------------------
# One-time staging of the per-element factor matrices (NOT per forward call).
# -----------------------------------------------------------------------------
def prepare_params(G1_list, G2_list):
    """Returns (G1T_stacked, G2_stacked, M_list, M_pad).

    G1T_stacked: (L, K1, M_pad)  -- transposed + zero-padded along M (lane-dense tiles)
    G2_stacked : (L, M_pad, K3)  -- zero-padded along M (only feeds a tiny einsum)
    """
    M_list = tuple(int(g.shape[0]) for g in G1_list)
    M_pad = max(128, ((max(M_list) + 127) // 128) * 128)
    G1T = jnp.stack([jnp.pad(g.T, ((0, 0), (0, M_pad - g.shape[0]))) for g in G1_list])
    G2s = jnp.stack([jnp.pad(g, ((0, M_pad - g.shape[0]), (0, 0))) for g in G2_list])
    return G1T, G2s, M_list, M_pad


def _choose_batch(L, N, K1, M_pad, budget_bytes=4 << 20):
    """Elements per grid step: fill ~budget_bytes of double-buffered VMEM per step."""
    per_elem = 4 * (N * M_pad        # output block
                    + K1 * M_pad     # G1T tile
                    + N + M_pad)     # t2 column + r3 row
    B = max(1, min(L, budget_bytes // max(2 * per_elem, 1)))  # x2: double buffering
    if L >= 2:
        # keep >= 2 parallel grid steps so both v7x TensorCores get work
        B = min(B, -(-L // 2))
    return B


# -----------------------------------------------------------------------------
# Jitted forward on staged parameters -> stacked (L, N, M_pad) output.
# -----------------------------------------------------------------------------
@jax.jit
def matrix_list_forward_stacked(C1, C2, G1T, G2s, O1, O2):
    N, K1 = C1.shape
    L = O1.shape[0]
    M_pad = G1T.shape[2]

    # Tiny rank-1 terms, computed once for all i (no extra MXU pushes / G2 DMA in-kernel).
    T2_cols = jnp.transpose(C2 @ O1.T)[:, :, None]          # (L, N, 1)
    R3_rows = jnp.einsum('lk,lmk->lm', O2, G2s)[:, None, :]  # (L, 1, M_pad)

    # Batch B elements per grid step; pad L up to a multiple of B with zeros.
    B = _choose_batch(L, N, K1, M_pad)
    num_steps = -(-L // B)
    L_pad = num_steps * B
    if L_pad != L:
        padL = ((0, L_pad - L), (0, 0), (0, 0))
        G1T = jnp.pad(G1T, padL)
        T2_cols = jnp.pad(T2_cols, padL)
        R3_rows = jnp.pad(R3_rows, padL)

    out_all = pl.pallas_call(
        _fused_kernel,
        out_shape=jax.ShapeDtypeStruct((L_pad, N, M_pad), jnp.float32),
        grid=(num_steps,),
        in_specs=[
            pl.BlockSpec((N, K1),        lambda s: (0, 0)),      # C1: VMEM-resident
            pl.BlockSpec((B, K1, M_pad), lambda s: (s, 0, 0)),   # G1T batch (lane-dense)
            pl.BlockSpec((B, N, 1),      lambda s: (s, 0, 0)),   # term2 columns
            pl.BlockSpec((B, 1, M_pad),  lambda s: (s, 0, 0)),   # term3 rows
        ],
        out_specs=pl.BlockSpec((B, N, M_pad), lambda s: (s, 0, 0)),
        compiler_params=pltpu.CompilerParams(
            dimension_semantics=("parallel",),                    # megacore on v7x
        ),
    )(C1, G1T, T2_cols, R3_rows)

    return out_all[:L]   # (L, N, M_pad); columns >= M_i are padding (must be sliced off)


def matrix_list_forward(C1, C2, G1T, G2s, O1, O2, M_list):
    """PyTorch-style output: list of (N, M_i) arrays (slices the stacked result)."""
    out_all = matrix_list_forward_stacked(C1, C2, G1T, G2s, O1, O2)
    return [out_all[i, :, :m] for i, m in enumerate(M_list)]


# -----------------------------------------------------------------------------
# Pure-JAX reference of the PyTorch forward, for verification.
# -----------------------------------------------------------------------------
def _reference_forward(C1, C2, G1_list, G2_list, O1, O2):
    L = O1.shape[0]
    outs = []
    for i in range(L):
        t1 = C1 @ G1_list[i].T                    # (N, M_i)
        t2 = C2 @ O1[i:i + 1].T                   # (N, 1)
        t3 = O2[i:i + 1] @ G2_list[i].T           # (1, M_i)
        outs.append(t1 + t2 + t3)
    return outs


if __name__ == "__main__":
    # Small, deterministic synthetic parameters (shapes per __init__):
    #   K1, K2, K3, L, N, M_list
    K1, K2, K3 = 8, 8, 8
    L = 3
    N = 16
    M_list = [128, 200, 96]   # exercises lane-aligned, padded and odd-length paths

    key = jax.random.PRNGKey(0)
    keys = jax.random.split(key, 4 + 2 * L)

    # torch.normal(0, 0.1, ...) equivalent
    C1 = 0.1 * jax.random.normal(keys[0], (N, K1), dtype=jnp.float32)
    C2 = 0.1 * jax.random.normal(keys[1], (N, K2), dtype=jnp.float32)
    O1 = 0.1 * jax.random.normal(keys[2], (L, K2), dtype=jnp.float32)
    O2 = 0.1 * jax.random.normal(keys[3], (L, K3), dtype=jnp.float32)
    G1_list = [0.1 * jax.random.normal(keys[4 + i], (M_list[i], K1), dtype=jnp.float32)
               for i in range(L)]
    G2_list = [0.1 * jax.random.normal(keys[4 + L + i], (M_list[i], K3), dtype=jnp.float32)
               for i in range(L)]

    # One-time staging (padded/transposed parameter format), then the fast forward.
    G1T, G2s, M_tuple, M_pad = prepare_params(G1_list, G2_list)
    outs = matrix_list_forward(C1, C2, G1T, G2s, O1, O2, M_tuple)
    outs = [jax.block_until_ready(o) for o in outs]

    refs = _reference_forward(C1, C2, G1_list, G2_list, O1, O2)
    for i, (o, r) in enumerate(zip(outs, refs)):
        assert o.shape == (N, M_list[i]), (o.shape, (N, M_list[i]))
        assert o.dtype == jnp.float32
        assert jnp.allclose(o, r, atol=1e-5, rtol=1e-5), f"mismatch at list index {i}"

    print("KERNEL_OK")
</pallas_src>

<mosaic_0001>
module attributes {stable_mosaic.version = 11 : i64} {
  func.func @_fused_kernel(%arg0: i32, %arg1: memref<16x8xf32, #tpu.memory_space<vmem>>, %arg2: memref<2x8x256xf32, #tpu.memory_space<vmem>>, %arg3: memref<2x16x1xf32, #tpu.memory_space<vmem>>, %arg4: memref<2x1x256xf32, #tpu.memory_space<vmem>>, %arg5: memref<2x16x256xf32, #tpu.memory_space<vmem>>) attributes {dimension_semantics = [#tpu.dimension_semantics<parallel>], iteration_bounds = array<i64: 2>, scalar_prefetch = 0 : i64, scratch_operands = 0 : i64, tpu.core_type = #tpu.core_type<tc>, window_params = [{pipeline_mode = #tpu.pipeline_mode<synchronous>, transform_indices = @transform_0, window_bounds = array<i64: 16, 8>}, {transform_indices = @transform_1, window_bounds = array<i64: 2, 8, 256>}, {transform_indices = @transform_2, window_bounds = array<i64: 2, 16, 1>}, {transform_indices = @transform_3, window_bounds = array<i64: 2, 1, 256>}, {transform_indices = @transform_4, window_bounds = array<i64: 2, 16, 256>}]} {
    %c0 = arith.constant 0 : index
    %c0_0 = arith.constant 0 : index
    %0 = vector.load %arg1[%c0, %c0_0] : memref<16x8xf32, #tpu.memory_space<vmem>>, vector<16x8xf32>
    %c0_1 = arith.constant 0 : index
    %c0_2 = arith.constant 0 : index
    %c0_3 = arith.constant 0 : index
    %1 = vector.load %arg2[%c0_1, %c0_2, %c0_3] : memref<2x8x256xf32, #tpu.memory_space<vmem>>, vector<1x8x256xf32>
    %2 = vector.shape_cast %1 : vector<1x8x256xf32> to vector<8x256xf32>
    %cst = arith.constant dense<0.000000e+00> : vector<16x256xf32>
    %3 = tpu.matmul %0, %2, %cst {dimension_numbers = #tpu.dot_dimension_numbers<[1], [0], [0], [1], [0, 0, 1, 1], [], []>} : vector<16x8xf32>, vector<8x256xf32>, vector<16x256xf32> -> vector<16x256xf32>
    %c0_4 = arith.constant 0 : index
    %c0_5 = arith.constant 0 : index
    %c0_6 = arith.constant 0 : index
    %4 = vector.load %arg3[%c0_4, %c0_5, %c0_6] : memref<2x16x1xf32, #tpu.memory_space<vmem>>, vector<1x16x1xf32>
    %5 = vector.shape_cast %4 : vector<1x16x1xf32> to vector<16x1xf32>
    %6 = vector.broadcast %5 : vector<16x1xf32> to vector<16x256xf32>
    %7 = arith.addf %3, %6 : vector<16x256xf32>
    %c0_7 = arith.constant 0 : index
    %c0_8 = arith.constant 0 : index
    %c0_9 = arith.constant 0 : index
    %8 = vector.load %arg4[%c0_7, %c0_8, %c0_9] : memref<2x1x256xf32, #tpu.memory_space<vmem>>, vector<1x1x256xf32>
    %9 = vector.shape_cast %8 : vector<1x1x256xf32> to vector<1x256xf32>
    %10 = vector.broadcast %9 : vector<1x256xf32> to vector<16x256xf32>
    %11 = arith.addf %7, %10 : vector<16x256xf32>
    %c0_10 = arith.constant 0 : index
    %c0_11 = arith.constant 0 : index
    %c0_12 = arith.constant 0 : index
    %12 = vector.load %arg5[%c0_10, %c0_11, %c0_12] : memref<2x16x256xf32, #tpu.memory_space<vmem>>, vector<1x16x256xf32>
    %13 = vector.shape_cast %12 : vector<1x16x256xf32> to vector<16x256xf32>
    %14 = vector.shape_cast %11 : vector<16x256xf32> to vector<1x16x256xf32>
    tpu.vector_store %arg5[%c0_10, %c0_11, %c0_12], %14 {strides = array<i32>} : memref<2x16x256xf32, #tpu.memory_space<vmem>>, vector<1x16x256xf32>,
    %c1 = arith.constant 1 : index
    %c0_13 = arith.constant 0 : index
    %c0_14 = arith.constant 0 : index
    %15 = vector.load %arg2[%c1, %c0_13, %c0_14] : memref<2x8x256xf32, #tpu.memory_space<vmem>>, vector<1x8x256xf32>
    %16 = vector.shape_cast %15 : vector<1x8x256xf32> to vector<8x256xf32>
    %cst_15 = arith.constant dense<0.000000e+00> : vector<16x256xf32>
    %17 = tpu.matmul %0, %16, %cst_15 {dimension_numbers = #tpu.dot_dimension_numbers<[1], [0], [0], [1], [0, 0, 1, 1], [], []>} : vector<16x8xf32>, vector<8x256xf32>, vector<16x256xf32> -> vector<16x256xf32>
    %c1_16 = arith.constant 1 : index
    %c0_17 = arith.constant 0 : index
    %c0_18 = arith.constant 0 : index
    %18 = vector.load %arg3[%c1_16, %c0_17, %c0_18] : memref<2x16x1xf32, #tpu.memory_space<vmem>>, vector<1x16x1xf32>
    %19 = vector.shape_cast %18 : vector<1x16x1xf32> to vector<16x1xf32>
    %20 = vector.broadcast %19 : vector<16x1xf32> to vector<16x256xf32>
    %21 = arith.addf %17, %20 : vector<16x256xf32>
    %c1_19 = arith.constant 1 : index
    %c0_20 = arith.constant 0 : index
    %c0_21 = arith.constant 0 : index
    %22 = vector.load %arg4[%c1_19, %c0_20, %c0_21] : memref<2x1x256xf32, #tpu.memory_space<vmem>>, vector<1x1x256xf32>
    %23 = vector.shape_cast %22 : vector<1x1x256xf32> to vector<1x256xf32>
    %24 = vector.broadcast %23 : vector<1x256xf32> to vector<16x256xf32>
    %25 = arith.addf %21, %24 : vector<16x256xf32>
    %c1_22 = arith.constant 1 : index
    %c0_23 = arith.constant 0 : index
    %c0_24 = arith.constant 0 : index
    %26 = vector.load %arg5[%c1_22, %c0_23, %c0_24] : memref<2x16x256xf32, #tpu.memory_space<vmem>>, vector<1x16x256xf32>
    %27 = vector.shape_cast %26 : vector<1x16x256xf32> to vector<16x256xf32>
    %28 = vector.shape_cast %25 : vector<16x256xf32> to vector<1x16x256xf32>
    tpu.vector_store %arg5[%c1_22, %c0_23, %c0_24], %28 {strides = array<i32>} : memref<2x16x256xf32, #tpu.memory_space<vmem>>, vector<1x16x256xf32>,
    return
  }
  func.func @transform_0(%arg0: i32) -> (i32, i32) {
    %c0_i32 = arith.constant 0 : i32
    %c0_i32_0 = arith.constant 0 : i32
    %c0_i32_1 = arith.constant 0 : i32
    return %c0_i32, %c0_i32_0 : i32, i32
  }
  func.func @transform_1(%arg0: i32) -> (i32, i32, i32) {
    %c0_i32 = arith.constant 0 : i32
    %c0_i32_0 = arith.constant 0 : i32
    %c0_i32_1 = arith.constant 0 : i32
    return %arg0, %c0_i32, %c0_i32_0 : i32, i32, i32
  }
  func.func @transform_2(%arg0: i32) -> (i32, i32, i32) {
    %c0_i32 = arith.constant 0 : i32
    %c0_i32_0 = arith.constant 0 : i32
    %c0_i32_1 = arith.constant 0 : i32
    return %arg0, %c0_i32, %c0_i32_0 : i32, i32, i32
  }
  func.func @transform_3(%arg0: i32) -> (i32, i32, i32) {
    %c0_i32 = arith.constant 0 : i32
    %c0_i32_0 = arith.constant 0 : i32
    %c0_i32_1 = arith.constant 0 : i32
    return %arg0, %c0_i32, %c0_i32_0 : i32, i32, i32
  }
  func.func @transform_4(%arg0: i32) -> (i32, i32, i32) {
    %c0_i32 = arith.constant 0 : i32
    %c0_i32_0 = arith.constant 0 : i32
    %c0_i32_1 = arith.constant 0 : i32
    return %arg0, %c0_i32, %c0_i32_0 : i32, i32, i32
  }
}

</mosaic_0001>

<llo_original>
// kernel: matrix_list_forward_stacked.1
$region0: #{matrix_list_forward_stacked.1}
  #allocation0 [shape = 'u32[]', space=smem, size = 0x4, offset = 0x4, fixed_abs, tag = 'smem constant byte address 0x4 - core index']
  #allocation1 [shape = 'u32[72,128]{1,0:T(1,128)}', space=vmem, size = 0x9000, scoped, tag = 'internal scratch']
  %s0 = inlined_call_operand.vmem [shape: f32[16,8], index: 0, kind: input, shape index: {}]
  %s1 = inlined_call_operand.vmem [shape: f32[4,8,256], index: 1, kind: input, shape index: {}]
  %s2 = inlined_call_operand.vmem [shape: f32[4,16,1], index: 2, kind: input, shape index: {}]
  %s3 = inlined_call_operand.vmem [shape: f32[4,1,256], index: 3, kind: input, shape index: {}]
  %s4 = inlined_call_operand.vmem [shape: f32[4,16,256], index: 4, kind: output, shape index: {}]
  %s5 = sld [smem:[#allocation0]]
  $region49: #{matrix_list_forward_stacked.1} parent=0
    _
  %s7 = ssub.s32 1, %s5
  %s8 = scalar_select 0, %s7, %s5
  loop: start=0, step=1, limit=4
  $region2: #{matrix_list_forward_stacked.1} parent=0 // loop_pre_header
    _
  $region3: #{matrix_list_forward_stacked.1} parent=0 // loop_header
    %s10 = sphi 0, %s14
    %p11 = scmp.ge.s32.totalorder %s10, 4
    %s18 = sphi 0, %s18
    %s20 = sphi 0, %s18
    %s21 = sphi 0, %s20
    %s35 = sphi 0, %s21
    %s41 = sphi 0, %s43
    %s44 = sphi 0, %s41
    %s45 = sphi 0, %s44
    %s61 = sphi 0, %s45
    %s67 = sphi 0, %s69
    %s70 = sphi 0, %s67
    %s71 = sphi 0, %s70
    %s87 = sphi 0, %s71
    %s93 = sphi 0, %s95
    %s96 = sphi 0, %s93
    %s97 = sphi 0, %s96
    %s113 = sphi 0, %s97
    %s119 = sphi 0, %s121
    %s122 = sphi 0, %s119
    %s123 = sphi 0, %s122
    %s139 = sphi 0, %s123
  $region4: #{matrix_list_forward_stacked.1} parent=0 // loop_header_branch
    %13 = sbr.rel (%p11) target = $region8
  $region5: #{matrix_list_forward_stacked.1} parent=0 // loop_body
    %s15 = ssub.s32 %s10, 1
    %s16 = ssub.s32 %s10, 2
    %s17 = sadd.s32 %s10, 1
    %s19 = sadd.s32 %s18, 1
    %p22 = scmp.eq.s32.totalorder %s10, 1
    %p23 = scmp.ne.s32.totalorder %s18, %s20
    %p24 = scmp.eq.s32.totalorder %s10, 0
    %p25 = por %p23, %p24
    %p26 = scmp.ne.s32.totalorder %s18, %s20
    %p27 = scmp.eq.s32.totalorder %s15, 1
    %p28 = por %p26, %p27
    %p29 = scmp.ne.s32.totalorder %s20, %s21
    %p30 = scmp.eq.s32.totalorder %s15, 0
    %p31 = por %p29, %p30
    %p32 = scmp.ne.s32.totalorder %s20, %s21
    %p33 = scmp.eq.s32.totalorder %s16, 1
    %p34 = por %p32, %p33
    %p36 = scmp.ne.s32.totalorder %s21, %s35
    %p37 = scmp.eq.s32.totalorder %s16, 0
    %p38 = por %p36, %p37
    %s39 = ssub.s32 %s10, %s17
    %p40 = scmp.eq.s32.totalorder %s39, 0
    %s42 = sadd.s32 %s41, 1
    %s43 = scalar_select %p40, %s41, %s42
    %p46 = pneg %p40
    %p47 = scmp.eq.s32.totalorder %s10, 1
    %p48 = por %p46, %p47
    %p49 = scmp.ne.s32.totalorder %s41, %s44
    %p50 = scmp.eq.s32.totalorder %s10, 0
    %p51 = por %p49, %p50
    %p52 = scmp.ne.s32.totalorder %s41, %s44
    %p53 = scmp.eq.s32.totalorder %s15, 1
    %p54 = por %p52, %p53
    %p55 = scmp.ne.s32.totalorder %s44, %s45
    %p56 = scmp.eq.s32.totalorder %s15, 0
    %p57 = por %p55, %p56
    %p58 = scmp.ne.s32.totalorder %s44, %s45
    %p59 = scmp.eq.s32.totalorder %s16, 1
    %p60 = por %p58, %p59
    %p62 = scmp.ne.s32.totalorder %s45, %s61
    %p63 = scmp.eq.s32.totalorder %s16, 0
    %p64 = por %p62, %p63
    %s65 = ssub.s32 %s10, %s17
    %p66 = scmp.eq.s32.totalorder %s65, 0
    %s68 = sadd.s32 %s67, 1
    %s69 = scalar_select %p66, %s67, %s68
    %p72 = pneg %p66
    %p73 = scmp.eq.s32.totalorder %s10, 1
    %p74 = por %p72, %p73
    %p75 = scmp.ne.s32.totalorder %s67, %s70
    %p76 = scmp.eq.s32.totalorder %s10, 0
    %p77 = por %p75, %p76
    %p78 = scmp.ne.s32.totalorder %s67, %s70
    %p79 = scmp.eq.s32.totalorder %s15, 1
    %p80 = por %p78, %p79
    %p81 = scmp.ne.s32.totalorder %s70, %s71
    %p82 = scmp.eq.s32.totalorder %s15, 0
    %p83 = por %p81, %p82
    %p84 = scmp.ne.s32.totalorder %s70, %s71
    %p85 = scmp.eq.s32.totalorder %s16, 1
    %p86 = por %p84, %p85
    %p88 = scmp.ne.s32.totalorder %s71, %s87
    %p89 = scmp.eq.s32.totalorder %s16, 0
    %p90 = por %p88, %p89
    %s91 = ssub.s32 %s10, %s17
    %p92 = scmp.eq.s32.totalorder %s91, 0
    %s94 = sadd.s32 %s93, 1
    %s95 = scalar_select %p92, %s93, %s94
    %p98 = pneg %p92
    %p99 = scmp.eq.s32.totalorder %s10, 1
    %p100 = por %p98, %p99
    %p101 = scmp.ne.s32.totalorder %s93, %s96
    %p102 = scmp.eq.s32.totalorder %s10, 0
    %p103 = por %p101, %p102
    %p104 = scmp.ne.s32.totalorder %s93, %s96
    %p105 = scmp.eq.s32.totalorder %s15, 1
    %p106 = por %p104, %p105
    %p107 = scmp.ne.s32.totalorder %s96, %s97
    %p108 = scmp.eq.s32.totalorder %s15, 0
    %p109 = por %p107, %p108
    %p110 = scmp.ne.s32.totalorder %s96, %s97
    %p111 = scmp.eq.s32.totalorder %s16, 1
    %p112 = por %p110, %p111
    %p114 = scmp.ne.s32.totalorder %s97, %s113
    %p115 = scmp.eq.s32.totalorder %s16, 0
    %p116 = por %p114, %p115
    %s117 = ssub.s32 %s10, %s17
    %p118 = scmp.eq.s32.totalorder %s117, 0
    %s120 = sadd.s32 %s119, 1
    %s121 = scalar_select %p118, %s119, %s120
    %p124 = pneg %p118
    %p125 = scmp.eq.s32.totalorder %s10, 1
    %p126 = por %p124, %p125
    %p127 = scmp.ne.s32.totalorder %s119, %s122
    %p128 = scmp.eq.s32.totalorder %s10, 0
    %p129 = por %p127, %p128
    %p130 = scmp.ne.s32.totalorder %s119, %s122
    %p131 = scmp.eq.s32.totalorder %s15, 1
    %p132 = por %p130, %p131
    %p133 = scmp.ne.s32.totalorder %s122, %s123
    %p134 = scmp.eq.s32.totalorder %s15, 0
    %p135 = por %p133, %p134
    %p136 = scmp.ne.s32.totalorder %s122, %s123
    %p137 = scmp.eq.s32.totalorder %s16, 1
    %p138 = por %p136, %p137
    %p140 = scmp.ne.s32.totalorder %s123, %s139
    %p141 = scmp.eq.s32.totalorder %s16, 0
    %p142 = por %p140, %p141
    %p143 = scmp.le.s32.totalorder 1, %s10
    %p144 = scmp.lt.s32.totalorder %s10, 3
    %p145 = pnand %p143, %p144
    %p146 = pneg %p145
    // Predicated region
    $region9: #{matrix_list_forward_stacked.1} parent=5 // pred_check
      _
    $region10: #{matrix_list_forward_stacked.1} parent=5 // pred_check_branch
      %148 = sbr.rel (%p145) target = $region12
    $region11: #{matrix_list_forward_stacked.1} parent=5 // pred_region
      %s149 = ssub.s32 %s10, 1
      // Predicated region
      $region13: #{matrix_list_forward_stacked.1} parent=11 // pred_check
        %p150 = pneg %p31
      $region14: #{matrix_list_forward_stacked.1} parent=11 // pred_check_branch
        %152 = sbr.rel (%p150) target = $region16
      $region15: #{matrix_list_forward_stacked.1} parent=11 // pred_region
        _
      $region16: #{matrix_list_forward_stacked.1} parent=11 // pred_fallthru
        _
    $region12: #{matrix_list_forward_stacked.1} parent=5 // pred_fallthru
      _
    %p153 = scmp.lt.s32.totalorder %s10, 2
    // Predicated region
    $region17: #{matrix_list_forward_stacked.1} parent=5 // pred_check
      %p154 = pneg %p153
    $region18: #{matrix_list_forward_stacked.1} parent=5 // pred_check_branch
      %156 = sbr.rel (%p154) target = $region20
    $region19: #{matrix_list_forward_stacked.1} parent=5 // pred_region
      // Predicated region
      $region21: #{matrix_list_forward_stacked.1} parent=19 // pred_check
        %p157 = pneg %p51
      $region22: #{matrix_list_forward_stacked.1} parent=19 // pred_check_branch
        %159 = sbr.rel (%p157) target = $region24
      $region23: #{matrix_list_forward_stacked.1} parent=19 // pred_region
        %s160 = smul.u32 2, %s10
        %p161 = scmp.lt.s32.totalorder %s160, 3
        %s162 = scalar_select %p161, %s160, 3
        %s163 = smul.addr %s162, 2
        %s164 = smul.addr %s163, 8
        %s165 = scalar_lea.vmem %s1, %s164
        %s166 = smul.u32 2, %s10
      $region24: #{matrix_list_forward_stacked.1} parent=19 // pred_fallthru
        _
      // Predicated region
      $region25: #{matrix_list_forward_stacked.1} parent=19 // pred_check
        %p167 = pneg %p77
      $region26: #{matrix_list_forward_stacked.1} parent=19 // pred_check_branch
        %169 = sbr.rel (%p167) target = $region28
      $region27: #{matrix_list_forward_stacked.1} parent=19 // pred_region
        %s170 = smul.u32 2, %s10
        %p171 = scmp.lt.s32.totalorder %s170, 3
        %s172 = scalar_select %p171, %s170, 3
        %s173 = smul.addr %s172, 2
        %s174 = smul.addr %s173, 8
        %s175 = scalar_lea.vmem %s2, %s174
        %s176 = smul.u32 2, %s10
      $region28: #{matrix_list_forward_stacked.1} parent=19 // pred_fallthru
        _
      // Predicated region
      $region29: #{matrix_list_forward_stacked.1} parent=19 // pred_check
        %p177 = pneg %p103
      $region30: #{matrix_list_forward_stacked.1} parent=19 // pred_check_branch
        %179 = sbr.rel (%p177) target = $region32
      $region31: #{matrix_list_forward_stacked.1} parent=19 // pred_region
        %s180 = smul.u32 2, %s10
        %p181 = scmp.lt.s32.totalorder %s180, 3
        %s182 = scalar_select %p181, %s180, 3
        %s183 = smul.addr %s182, 2
        %s184 = scalar_lea.vmem %s3, %s183
        %s185 = smul.u32 2, %s10
      $region32: #{matrix_list_forward_stacked.1} parent=19 // pred_fallthru
        _
    $region20: #{matrix_list_forward_stacked.1} parent=5 // pred_fallthru
      _
    %p186 = scmp.le.s32.totalorder 1, %s10
    %p187 = scmp.lt.s32.totalorder %s10, 3
    %p188 = pnand %p186, %p187
    %p189 = pneg %p188
    // Predicated region
    $region33: #{matrix_list_forward_stacked.1} parent=5 // pred_check
      _
    $region34: #{matrix_list_forward_stacked.1} parent=5 // pred_check_branch
      %191 = sbr.rel (%p188) target = $region36
    $region35: #{matrix_list_forward_stacked.1} parent=5 // pred_region
      %s192 = ssub.s32 %s10, 1
      %p193 = pneg %p31
      %p194 = pneg %p28
      %s195 = smul.u32 2, %s15
      %p196 = scmp.lt.s32.totalorder %s195, 3
      %s197 = scalar_select %p196, %s195, 3
      %s198 = smul.addr %s197, 2
      %s199 = smul.addr %s198, 8
      %s200 = scalar_lea.vmem %s1, %s199
      %p201 = pneg %p57
      %p202 = pneg %p54
      %s203 = smul.u32 2, %s15
      %p204 = scmp.lt.s32.totalorder %s203, 3
      %s205 = scalar_select %p204, %s203, 3
      %s206 = smul.addr %s205, 2
      %s207 = smul.addr %s206, 8
      %s208 = scalar_lea.vmem %s2, %s207
      %p209 = pneg %p83
      %p210 = pneg %p80
      %s211 = smul.u32 2, %s15
      %p212 = scmp.lt.s32.totalorder %s211, 3
      %s213 = scalar_select %p212, %s211, 3
      %s214 = smul.addr %s213, 2
      %s215 = scalar_lea.vmem %s3, %s214
      %p216 = pneg %p109
      %p217 = pneg %p106
      %p218 = pneg %p135
      %p219 = pneg %p132
      %s220 = smul.u32 2, %s15
      %p221 = scmp.lt.s32.totalorder %s220, 3
      %s222 = scalar_select %p221, %s220, 3
      %s223 = smul.addr %s222, 4
      %s224 = smul.addr %s223, 8
      %s225 = scalar_lea.vmem %s4, %s224
      %s226 = smul.u32 2, %s15
      %p227 = scmp.lt.s32.totalorder %s226, 3
      %s228 = scalar_select %p227, %s226, 3
      %s229 = smul.addr %s228, 2
      %s230 = smul.addr %s229, 8
      %s231 = scalar_lea.vmem %s1, %s230
      %s232 = smul.u32 2, %s15
      %s233 = smul.u32 2, %s15
      %p234 = scmp.lt.s32.totalorder %s233, 3
      %s235 = scalar_select %p234, %s233, 3
      %s236 = smul.addr %s235, 2
      %s237 = smul.addr %s236, 8
      %s238 = scalar_lea.vmem %s2, %s237
      %s239 = smul.u32 2, %s15
      %s240 = smul.u32 2, %s15
      %p241 = scmp.lt.s32.totalorder %s240, 3
      %s242 = scalar_select %p241, %s240, 3
      %s243 = smul.addr %s242, 2
      %s244 = scalar_lea.vmem %s3, %s243
      %s245 = smul.u32 2, %s15
      %s246 = smul.u32 2, %s15
      %p247 = scmp.lt.s32.totalorder %s246, 3
      %s248 = scalar_select %p247, %s246, 3
      %s249 = smul.addr %s248, 4
      %s250 = smul.addr %s249, 8
      %s251 = scalar_lea.vmem %s4, %s250
      %s252 = smul.u32 2, %s15
      %v253 = vld [vmem:[%s0] sm:$0xff]
      %v254 = vld [vmem:[%s0 + $0x8] sm:$0xff]
      %v255 = vld [vmem:[%s231] sm:$0xff]
      %v256 = vld [vmem:[%s231 + $0x8] sm:$0xff]
      %v257 = vld [vmem:[%s238] sm:$0xff]
      %v258 = vld [vmem:[%s238 + $0x8] sm:$0xff]
      %260 = vset.pattern.permute.xlu0 0
      %261 = vperm.xlu0 %260, %v257
      %v262 = vpop.permute.xlu0 %261
      %265 = vset.pattern.permute.xlu0 0
      %266 = vperm.xlu0 %265, %v258
      %v267 = vpop.permute.xlu0 %266
      %vm269 = vcmask 64512
      %v271 = vsel %vm269, %v253, 0
      %v274 = vsel %vm269, %v254, 0
      %276 = vmatpush.msra.mxu0 0.0
      %277 = vmatpush.msra.mxu0 0.0
      %278 = vmatpush.msra.mxu0 0.0
      %279 = vmatpush.msra.mxu0 0.0
      %280 = vmatpush.msra.mxu0 0.0
      %281 = vmatpush.msra.mxu0 0.0
      %282 = vmatpush.msra.mxu0 0.0
      %283 = vmatpush.msra.mxu0 0.0
      %284 = vmatpush.msra.mxu0 0.0
      %285 = vmatpush.msra.mxu0 0.0
      %286 = vmatpush.msra.mxu0 0.0
      %287 = vmatpush.msra.mxu0 0.0
      %288 = vmatpush.msra.mxu0 0.0
      %289 = vmatpush.msra.mxu0 0.0
      %290 = vmatpush.msra.mxu0 0.0
      %291 = vmatpush.msra.mxu0 %v255
      %292 = vmatmul.f32.gmra.mxu0 %v271
      %v293 = vpop.f32.mrf.mxu0
      %v294 = vadd.f32 %v262, %v293
      %295 = vmatmul.f32.gmra.mxu0 %v274
      %v296 = vpop.f32.mrf.mxu0
      %v297 = vadd.f32 %v267, %v296
      %298 = vdwg.mxu0
      %299 = vmatpush.msra.mxu0 0.0
      %300 = vmatpush.msra.mxu0 0.0
      %301 = vmatpush.msra.mxu0 0.0
      %302 = vmatpush.msra.mxu0 0.0
      %303 = vmatpush.msra.mxu0 0.0
      %304 = vmatpush.msra.mxu0 0.0
      %305 = vmatpush.msra.mxu0 0.0
      %306 = vmatpush.msra.mxu0 0.0
      %307 = vmatpush.msra.mxu0 0.0
      %308 = vmatpush.msra.mxu0 0.0
      %309 = vmatpush.msra.mxu0 0.0
      %310 = vmatpush.msra.mxu0 0.0
      %311 = vmatpush.msra.mxu0 0.0
      %312 = vmatpush.msra.mxu0 0.0
      %313 = vmatpush.msra.mxu0 0.0
      %314 = vmatpush.msra.mxu0 %v256
      %315 = vmatmul.f32.gmra.mxu0 %v271
      %v316 = vpop.f32.mrf.mxu0
      %v317 = vadd.f32 %v262, %v316
      %318 = vmatmul.f32.gmra.mxu0 %v274
      %v319 = vpop.f32.mrf.mxu0
      %v320 = vadd.f32 %v267, %v319
      %321 = vdwg.mxu0
      %v322 = vld [vmem:[%s244] sm:$0x3]
      %v324 = vperm.slane %v322, 0
      %v325 = vperm.slane %v322, 1
      %v328 = vadd.f32 %v294, %v324
      %v329 = vadd.f32 %v317, %v325
      %v330 = vadd.f32 %v297, %v324
      %v331 = vadd.f32 %v320, %v325
      %332 = vst [vmem:[%s251] sm:$0xff] %v328
      %333 = vst [vmem:[%s251 + $0x8] sm:$0xff] %v329
      %334 = vst [vmem:[%s251 + $0x10] sm:$0xff] %v330
      %335 = vst [vmem:[%s251 + $0x18] sm:$0xff] %v331
      %s336 = scalar_lea.vmem %s231, 16
      %v337 = vld [vmem:[%s336] sm:$0xff]
      %v338 = vld [vmem:[%s336 + $0x8] sm:$0xff]
      %s339 = scalar_lea.vmem %s238, 16
      %v340 = vld [vmem:[%s339] sm:$0xff]
      %v341 = vld [vmem:[%s339 + $0x8] sm:$0xff]
      %343 = vset.pattern.permute.xlu0 0
      %344 = vperm.xlu0 %343, %v340
      %v345 = vpop.permute.xlu0 %344
      %348 = vset.pattern.permute.xlu0 0
      %349 = vperm.xlu0 %348, %v341
      %v350 = vpop.permute.xlu0 %349
      %352 = vmatpush.msra.mxu0 0.0
      %353 = vmatpush.msra.mxu0 0.0
      %354 = vmatpush.msra.mxu0 0.0
      %355 = vmatpush.msra.mxu0 0.0
      %356 = vmatpush.msra.mxu0 0.0
      %357 = vmatpush.msra.mxu0 0.0
      %358 = vmatpush.msra.mxu0 0.0
      %359 = vmatpush.msra.mxu0 0.0
      %360 = vmatpush.msra.mxu0 0.0
      %361 = vmatpush.msra.mxu0 0.0
      %362 = vmatpush.msra.mxu0 0.0
      %363 = vmatpush.msra.mxu0 0.0
      %364 = vmatpush.msra.mxu0 0.0
      %365 = vmatpush.msra.mxu0 0.0
      %366 = vmatpush.msra.mxu0 0.0
      %367 = vmatpush.msra.mxu0 %v337
      %368 = vmatmul.f32.gmra.mxu0 %v271
      %v369 = vpop.f32.mrf.mxu0
      %v370 = vadd.f32 %v345, %v369
      %371 = vmatmul.f32.gmra.mxu0 %v274
      %v372 = vpop.f32.mrf.mxu0
      %v373 = vadd.f32 %v350, %v372
      %374 = vdwg.mxu0
      %375 = vmatpush.msra.mxu0 0.0
      %376 = vmatpush.msra.mxu0 0.0
      %377 = vmatpush.msra.mxu0 0.0
      %378 = vmatpush.msra.mxu0 0.0
      %379 = vmatpush.msra.mxu0 0.0
      %380 = vmatpush.msra.mxu0 0.0
      %381 = vmatpush.msra.mxu0 0.0
      %382 = vmatpush.msra.mxu0 0.0
      %383 = vmatpush.msra.mxu0 0.0
      %384 = vmatpush.msra.mxu0 0.0
      %385 = vmatpush.msra.mxu0 0.0
      %386 = vmatpush.msra.mxu0 0.0
      %387 = vmatpush.msra.mxu0 0.0
      %388 = vmatpush.msra.mxu0 0.0
      %389 = vmatpush.msra.mxu0 0.0
      %390 = vmatpush.msra.mxu0 %v338
      %391 = vmatmul.f32.gmra.mxu0 %v271
      %v392 = vpop.f32.mrf.mxu0
      %v393 = vadd.f32 %v345, %v392
      %394 = vmatmul.f32.gmra.mxu0 %v274
      %v395 = vpop.f32.mrf.mxu0
      %v396 = vadd.f32 %v350, %v395
      %397 = vdwg.mxu0
      %s398 = scalar_lea.vmem %s244, 2
      %v399 = vld [vmem:[%s398] sm:$0x3]
      %v401 = vperm.slane %v399, 0
      %v402 = vperm.slane %v399, 1
      %v405 = vadd.f32 %v370, %v401
      %v406 = vadd.f32 %v393, %v402
      %v407 = vadd.f32 %v373, %v401
      %v408 = vadd.f32 %v396, %v402
      %s409 = scalar_lea.vmem %s251, 32
      %410 = vst [vmem:[%s409] sm:$0xff] %v405
      %411 = vst [vmem:[%s409 + $0x8] sm:$0xff] %v406
      %412 = vst [vmem:[%s409 + $0x10] sm:$0xff] %v407
      %413 = vst [vmem:[%s409 + $0x18] sm:$0xff] %v408
      %s414 = smul.u32 2, %s15
      %p415 = scmp.lt.s32.totalorder %s414, 3
      %s416 = scalar_select %p415, %s414, 3
      %s417 = smul.addr %s416, 4
      %s418 = smul.addr %s417, 8
      %s419 = scalar_lea.vmem %s4, %s418
      // Predicated region
      $region37: #{matrix_list_forward_stacked.1} parent=35 // pred_check
        %p420 = pneg %p132
      $region38: #{matrix_list_forward_stacked.1} parent=35 // pred_check_branch
        %422 = sbr.rel (%p420) target = $region40
      $region39: #{matrix_list_forward_stacked.1} parent=35 // pred_region
        %s423 = smul.u32 2, %s15
      $region40: #{matrix_list_forward_stacked.1} parent=35 // pred_fallthru
        _
    $region36: #{matrix_list_forward_stacked.1} parent=5 // pred_fallthru
      _
    %p424 = scmp.le.s32.totalorder 2, %s10
    // Predicated region
    $region41: #{matrix_list_forward_stacked.1} parent=5 // pred_check
      %p425 = pneg %p424
    $region42: #{matrix_list_forward_stacked.1} parent=5 // pred_check_branch
      %427 = sbr.rel (%p425) target = $region44
    $region43: #{matrix_list_forward_stacked.1} parent=5 // pred_region
      %s428 = ssub.s32 %s10, 2
      // Predicated region
      $region45: #{matrix_list_forward_stacked.1} parent=43 // pred_check
        %p429 = pneg %p138
      $region46: #{matrix_list_forward_stacked.1} parent=43 // pred_check_branch
        %431 = sbr.rel (%p429) target = $region48
      $region47: #{matrix_list_forward_stacked.1} parent=43 // pred_region
        %s432 = smul.u32 2, %s16
        %p433 = scmp.lt.s32.totalorder %s432, 3
        %s434 = scalar_select %p433, %s432, 3
        %s435 = smul.addr %s434, 4
        %s436 = smul.addr %s435, 8
        %s437 = scalar_lea.vmem %s4, %s436
      $region48: #{matrix_list_forward_stacked.1} parent=43 // pred_fallthru
        _
    $region44: #{matrix_list_forward_stacked.1} parent=5 // pred_fallthru
      _
  $region6: #{matrix_list_forward_stacked.1} parent=0 // loop_footer
    %s14 = sadd.s32 1, %s10
  $region7: #{matrix_list_forward_stacked.1} parent=0 // loop_footer_branch
    %9 = sbr.rel target = $region3
  $region8: #{matrix_list_forward_stacked.1} parent=0 // loop_exit
    _

</llo_original>
